<compile_context>
chip_gen: v6e
topology: v6e:2x2x1
jax: 0.10.0
libtpu: 0.0.40
codegen_flags: <defaults>
</compile_context>

<pallas_src>
import jax
import jax.numpy as jnp
from jax.experimental import pallas as pl
from jax.experimental.pallas import tpu as pltpu


# ---------------------------------------------------------------------------
# Kernels
# ---------------------------------------------------------------------------
def softmax_dim0_kernel(x_ref, o_ref):
    """Stable softmax over axis 0 of an (N, TILE_D) block (full N resident)."""
    x = x_ref[...].astype(jnp.float32)
    x_max = jnp.max(x, axis=0, keepdims=True)            # (1, TILE_D)  XLU
    x_exp = jnp.exp(x - x_max)                            # (N, TILE_D)  EUP
    partition = jnp.sum(x_exp, axis=0, keepdims=True)     # (1, TILE_D) >= 1
    inv = pl.reciprocal(partition, approx=True)            # EUP, not VPU divide
    o_ref[...] = (x_exp * inv).astype(o_ref.dtype)


def softmax_lane_kernel(x_ref, o_ref):
    """Stable softmax over the last axis of a (1, N) block (1-D input path)."""
    x = x_ref[...].astype(jnp.float32)
    x_max = jnp.max(x, axis=-1, keepdims=True)
    x_exp = jnp.exp(x - x_max)
    partition = jnp.sum(x_exp, axis=-1, keepdims=True)
    inv = pl.reciprocal(partition, approx=True)
    o_ref[...] = (x_exp * inv).astype(o_ref.dtype)


# ---------------------------------------------------------------------------
# Tile sizing
# ---------------------------------------------------------------------------
def _pick_tile_d(n_rows, n_cols, itemsize):
    """Pick a lane-dense column tile (multiple of 128) sized for VMEM.

    Budget ~2 MiB per (N, TILE_D) f32 buffer.  Total VMEM footprint is roughly
    2x input (double-buffered) + 2x output (double-buffered) + intermediates
    ~= 5-6x the budget, i.e. ~12 MiB: safely under the smallest scoped-VMEM
    default (v5e 16 MiB) and well inside v7x's 64 MiB physical VMEM.
    """
    budget_bytes = 2 * 1024 * 1024
    bytes_per_col = n_rows * max(int(itemsize), 4)        # f32 intermediates
    max_cols = max(budget_bytes // max(bytes_per_col, 1), 128)
    tile = max((max_cols // 128) * 128, 128)
    if n_cols <= tile:
        # Full-extent last dim is always a legal block shape.
        return n_cols
    return tile


# ---------------------------------------------------------------------------
# Wrapper
# ---------------------------------------------------------------------------
def softmax_stable(x):
    """Stable softmax over axis 0, matching SoftmaxStable.forward."""
    orig_shape = x.shape

    # 1-D: put the (only) axis on lanes instead of a (N, 1) layout.
    if x.ndim == 1:
        n = x.shape[0]
        x2 = x.reshape(1, n)
        out = pl.pallas_call(
            softmax_lane_kernel,
            out_shape=jax.ShapeDtypeStruct((1, n), x2.dtype),
            in_specs=[pl.BlockSpec((1, n), lambda: (0, 0))],
            out_specs=pl.BlockSpec((1, n), lambda: (0, 0)),
        )(x2)
        return out.reshape(orig_shape)

    # N-D: flatten trailing dims onto the lane axis; reduce over axis 0.
    x2 = x.reshape(x.shape[0], -1)
    n_rows, n_cols = x2.shape
    tile_d = _pick_tile_d(n_rows, n_cols, jnp.dtype(x2.dtype).itemsize)
    grid = (pl.cdiv(n_cols, tile_d),)

    out = pl.pallas_call(
        softmax_dim0_kernel,
        out_shape=jax.ShapeDtypeStruct((n_rows, n_cols), x2.dtype),
        grid=grid,
        in_specs=[pl.BlockSpec((n_rows, tile_d), lambda j: (0, j))],
        out_specs=pl.BlockSpec((n_rows, tile_d), lambda j: (0, j)),
        compiler_params=pltpu.CompilerParams(
            dimension_semantics=("parallel",),
        ),
    )(x2)
    return out.reshape(orig_shape)


# ---------------------------------------------------------------------------
# Reference + tests
# ---------------------------------------------------------------------------
def _ref_softmax_dim0(x):
    x_max = jnp.max(x, axis=0, keepdims=True)
    x_exp = jnp.exp(x - x_max)
    return x_exp / jnp.sum(x_exp, axis=0, keepdims=True)


if __name__ == "__main__":
    key = jax.random.PRNGKey(0)
    k1, k2, k3, k4 = jax.random.split(key, 4)

    # Approx reciprocal (EUP) has ~1e-3-level relative error in the normalizer.
    ATOL = 2e-3
    RTOL = 2e-3

    # 1) Small 2-D case consistent with the module: softmax over dim 0.
    x_small = jax.random.normal(k1, (8, 32), dtype=jnp.float32)
    y_small = jax.block_until_ready(softmax_stable(x_small))
    assert jnp.allclose(y_small, _ref_softmax_dim0(x_small), atol=ATOL, rtol=RTOL)
    assert jnp.allclose(jnp.sum(y_small, axis=0), jnp.ones((32,)), atol=5e-3)

    # 2) Wider case that exercises the column-tiled path / big lane-dense tiles.
    x_wide = jax.random.normal(k2, (8, 4096), dtype=jnp.float32)
    y_wide = jax.block_until_ready(softmax_stable(x_wide))
    assert jnp.allclose(y_wide, _ref_softmax_dim0(x_wide), atol=ATOL, rtol=RTOL)
    assert jnp.allclose(jnp.sum(y_wide, axis=0), jnp.ones((4096,)), atol=5e-3)

    # 3) Taller case that forces multiple grid steps (tile_d < n_cols).
    x_tall = jax.random.normal(k3, (512, 8192), dtype=jnp.float32)
    y_tall = jax.block_until_ready(softmax_stable(x_tall))
    assert jnp.allclose(y_tall, _ref_softmax_dim0(x_tall), atol=ATOL, rtol=RTOL)

    # 4) 3-D case (trailing dims flattened onto lanes, reduction over dim 0)
    #    and 1-D case via the lane-dense variant kernel.
    x_3d = jax.random.normal(k3, (4, 8, 16), dtype=jnp.float32)
    y_3d = jax.block_until_ready(softmax_stable(x_3d))
    assert jnp.allclose(y_3d, _ref_softmax_dim0(x_3d), atol=ATOL, rtol=RTOL)

    x_1d = jax.random.normal(k4, (64,), dtype=jnp.float32)
    y_1d = jax.block_until_ready(softmax_stable(x_1d))
    assert jnp.allclose(y_1d, _ref_softmax_dim0(x_1d), atol=ATOL, rtol=RTOL)
    assert jnp.allclose(jnp.sum(y_1d), 1.0, atol=5e-3)

    print("KERNEL_OK")
</pallas_src>

<mosaic_0001>
module attributes {stable_mosaic.version = 11 : i64} {
  func.func @softmax_dim0_kernel(%arg0: i32, %arg1: memref<8x32xf32, #tpu.memory_space<vmem>>, %arg2: memref<8x32xf32, #tpu.memory_space<vmem>>) attributes {dimension_semantics = [#tpu.dimension_semantics<parallel>], iteration_bounds = array<i64: 1>, scalar_prefetch = 0 : i64, scratch_operands = 0 : i64, tpu.core_type = #tpu.core_type<tc>, window_params = [{transform_indices = @transform_0, window_bounds = array<i64: 8, 32>}, {transform_indices = @transform_1, window_bounds = array<i64: 8, 32>}]} {
    %c0 = arith.constant 0 : index
    %c0_0 = arith.constant 0 : index
    %0 = vector.load %arg1[%c0, %c0_0] : memref<8x32xf32, #tpu.memory_space<vmem>>, vector<8x32xf32>
    %cst = arith.constant dense<0xFF800000> : vector<32xf32>
    %1 = vector.multi_reduction <maximumf>, %0, %cst [0] : vector<8x32xf32> to vector<32xf32>
    %2 = vector.shape_cast %1 : vector<32xf32> to vector<1x32xf32>
    %3 = vector.broadcast %2 : vector<1x32xf32> to vector<8x32xf32>
    %4 = arith.subf %0, %3 : vector<8x32xf32>
    %5 = math.exp %4 : vector<8x32xf32>
    %cst_1 = arith.constant dense<0.000000e+00> : vector<32xf32>
    %6 = vector.multi_reduction <add>, %5, %cst_1 [0] : vector<8x32xf32> to vector<32xf32>
    %7 = vector.shape_cast %6 : vector<32xf32> to vector<1x32xf32>
    %8 = tpu.reciprocal %7 {approx = true} : vector<1x32xf32> -> vector<1x32xf32>
    %9 = vector.broadcast %8 : vector<1x32xf32> to vector<8x32xf32>
    %10 = arith.mulf %5, %9 : vector<8x32xf32>
    %c0_2 = arith.constant 0 : index
    %c0_3 = arith.constant 0 : index
    %11 = vector.load %arg2[%c0_2, %c0_3] : memref<8x32xf32, #tpu.memory_space<vmem>>, vector<8x32xf32>
    tpu.vector_store %arg2[%c0_2, %c0_3], %10 {strides = array<i32>} : memref<8x32xf32, #tpu.memory_space<vmem>>, vector<8x32xf32>,
    return
  }
  func.func @transform_0(%arg0: i32) -> (i32, i32) {
    %c0_i32 = arith.constant 0 : i32
    %c0_i32_0 = arith.constant 0 : i32
    return %c0_i32, %arg0 : i32, i32
  }
  func.func @transform_1(%arg0: i32) -> (i32, i32) {
    %c0_i32 = arith.constant 0 : i32
    %c0_i32_0 = arith.constant 0 : i32
    return %c0_i32, %arg0 : i32, i32
  }
}

</mosaic_0001>

<llo_original>
// kernel: tpu_custom_call.1
$region0: #{tpu_custom_call.1}
  #allocation0 [shape = 'u32[]', space=smem, size = 0x4, offset = 0x4, fixed_abs, tag = 'smem constant byte address 0x4 - core index']
  #allocation1 [shape = 'u32[144,128]{1,0:T(1,128)}', space=vmem, size = 0x12000, scoped, tag = 'internal scratch']
  %s0 = inlined_call_operand.hbm [shape: f32[8,32], index: 0, kind: input, shape index: {}]
  %s1 = inlined_call_operand.hbm [shape: f32[8,32], index: 1, kind: output, shape index: {}]
  %s2 = sld [smem:[#allocation0]]
  $region18: #{tpu_custom_call.1} parent=0
    _
  %s4 = ssub.s32 1, %s2
  %s5 = scalar_select 0, %s4, %s2
  $region1: #{tpu_custom_call.1} parent=0
    #allocation2 [shape = 'u8[4096]{0}', space=vmem, size = 0x1000, scoped, tag = 'input window, operand 0, single buffered']
    #allocation3 [shape = 's32[1]{0}', space=sflag, size = 0x4, scoped, tag = 'scoped memory for tpu_custom_call.1']
    #allocation4 [shape = 's32[1]{0}', space=sflag, size = 0x4, scoped, tag = 'scoped memory for tpu_custom_call.1']
    #allocation5 [shape = 'u8[4096]{0}', space=vmem, size = 0x1000, scoped, tag = 'output window, operand 0, single buffered']
    %6 = vsyncpa [#allocation3], 0
    %7 = vsyncpa [#allocation4], 0
    // Predicated region
    $region2: #{tpu_custom_call.1} parent=1 // pred_check
      _
    $region3: #{tpu_custom_call.1} parent=1 // pred_check_branch
      %9 = sbr.rel (0) target = $region5
    $region4: #{tpu_custom_call.1} parent=1 // pred_region
      %s11 = ssub.s32 128, 128
      %12 = vsyncadd [#allocation3], %s11
      %s14 = sshll.u32 [#allocation2], 4
      %s15 = int_to_ptr.vmem [resolvable:$true] %s14
      %17 = dma.hbm_to_vmem [thread:$0]  %s0, 128, %s15, [#allocation3]
    $region5: #{tpu_custom_call.1} parent=1 // pred_fallthru
      _
    // Predicated region
    $region6: #{tpu_custom_call.1} parent=1 // pred_check
      _
    $region7: #{tpu_custom_call.1} parent=1 // pred_check_branch
      %19 = sbr.rel (0) target = $region9
    $region8: #{tpu_custom_call.1} parent=1 // pred_region
      %20 = dma.done [#allocation3], 128
    $region9: #{tpu_custom_call.1} parent=1 // pred_fallthru
      _
    %v21 = vld [vmem:[#allocation2] sm:$0xff]
    %vm22 = vcmask 261120
    %v23 = vsel %vm22, %v21, -inf
    %v24 = vrot.slane %v23, 4
    %v25 = vmax.f32 %v23, %v24
    %v26 = vrot.slane %v25, 2
    %v27 = vmax.f32 %v25, %v26
    %v28 = vrot.slane %v27, 1
    %v29 = vmax.f32 %v27, %v28
    %v30 = vsub.f32 %v21, %v29
    %v31 = vmul.f32 %v30, 1.442695
    %v32 = vpow.pop %v31
    %v33 = vsel %vm22, %v32, 0.0
    %v34 = vrot.slane %v33, 4
    %v35 = vadd.f32 %v33, %v34
    %v36 = vrot.slane %v35, 2
    %v37 = vadd.f32 %v35, %v36
    %v38 = vrot.slane %v37, 1
    %v39 = vadd.f32 %v37, %v38
    %v40 = vrcp.pop %v39
    %v41 = vmul.f32 %v32, %v40
    %42 = vst.msk [vmem:[#allocation5] sm:$0xff] %vm22, %v41
    // Predicated region
    $region10: #{tpu_custom_call.1} parent=1 // pred_check
      _
    $region11: #{tpu_custom_call.1} parent=1 // pred_check_branch
      %44 = sbr.rel (0) target = $region13
    $region12: #{tpu_custom_call.1} parent=1 // pred_region
      %s46 = ssub.s32 128, 128
      %47 = vsyncadd [#allocation4], %s46
      %s49 = sshll.u32 [#allocation5], 4
      %s50 = int_to_ptr.vmem [resolvable:$true] %s49
      %52 = dma.vmem_to_hbm [thread:$0]  %s50, 128, %s1, [#allocation4]
    $region13: #{tpu_custom_call.1} parent=1 // pred_fallthru
      _
    // Predicated region
    $region14: #{tpu_custom_call.1} parent=1 // pred_check
      _
    $region15: #{tpu_custom_call.1} parent=1 // pred_check_branch
      %54 = sbr.rel (0) target = $region17
    $region16: #{tpu_custom_call.1} parent=1 // pred_region
      %55 = dma.done [#allocation4], 128
    $region17: #{tpu_custom_call.1} parent=1 // pred_fallthru
      _
    %56 = vsyncpa [#allocation3], 1
    %57 = vsyncpa [#allocation4], 1

</llo_original>
